<compile_context>
chip_gen: v5e
topology: v5e:2x2
jax: 0.10.0
libtpu: 0.0.40
codegen_flags: <defaults>
</compile_context>

<pallas_src>
import jax
import jax.numpy as jnp
from jax.experimental import pallas as pl
from jax.experimental.pallas import tpu as pltpu


def _mlp_kernel(x_ref, w1_ref, b1_ref, w2_ref, b2_ref, o_ref):
    # fc_1: Linear(in_dim -> hidden) + ReLU, f32 MXU accumulation.
    x = x_ref[...]                                                    # (tb, in_dim) f32
    h = jnp.dot(x, w1_ref[...], preferred_element_type=jnp.float32) + b1_ref[...]
    h = jnp.maximum(h, 0.0)
    # out: Linear(hidden -> n_skills); narrow output block -> masked-lane store,
    # but only n_skills*4 bytes/row of HBM writeback.
    y = jnp.dot(h, w2_ref[...], preferred_element_type=jnp.float32) + b2_ref[...]
    o_ref[...] = y.astype(o_ref.dtype)


def _round_up(v, m):
    return (v + m - 1) // m * m


def _pick_tile(B, block_b):
    """Batch tile: large (amortise ~0.35us/grid-step), 8-row aligned, dividing B
    whenever cheaply possible (no host pad pass, no wasted tail rows), and
    giving >=4 grid steps for big batches (v7x megacore split)."""
    if B <= 8 or B % 8 != 0:
        return B if B <= block_b else block_b          # full-array tile, or padded tail
    if B <= block_b:
        # Split a VMEM-sized batch into a few equal tiles so the "parallel"
        # axis feeds both v7x TensorCores, as long as the pieces stay large.
        for parts in (4, 2):
            t = B // parts
            if B % parts == 0 and t % 8 == 0 and t >= 256:
                return t
        return B
    # B > block_b: aim for >=4 steps and a multiple-of-8 divisor of B near the cap.
    cap = min(block_b, max(256, _round_up(-(-B // 4), 8)))
    cap = (cap // 8) * 8
    for t in range(cap, cap // 2, -8):
        if B % t == 0:
            return t
    return cap                                          # no nice divisor: pad the tail


def binary_classifier_forward(x, w1, b1, w2, b2, *, block_b=1024):
    """x : (B, rnn_hidden_dim + n_actions) f32
       w1: (in_dim, hidden)    b1: (hidden,) or (1, hidden)
       w2: (hidden, n_skills)  b2: (n_skills,) or (1, n_skills)
       returns pred_label: (B, n_skills) f32  ==  relu(x @ w1 + b1) @ w2 + b2"""
    B, in_dim = x.shape
    hidden = w1.shape[1]
    n_skills = w2.shape[1]
    w1 = w1.astype(jnp.float32)
    w2 = w2.astype(jnp.float32)
    b1 = b1.reshape(1, hidden).astype(jnp.float32)
    b2 = b2.reshape(1, n_skills).astype(jnp.float32)

    tb = _pick_tile(B, block_b)
    b_pad = _round_up(B, tb)
    # Only materialise a padded copy of x if the tile really doesn't divide B.
    x_in = x if b_pad == B else jnp.zeros((b_pad, in_dim), x.dtype).at[:B].set(x)

    vmem = pltpu.MemorySpace.VMEM
    out = pl.pallas_call(
        _mlp_kernel,
        out_shape=jax.ShapeDtypeStruct((b_pad, n_skills), jnp.float32),
        grid=(b_pad // tb,),
        in_specs=[
            # streamed activation tile (auto double-buffered HBM->VMEM)
            pl.BlockSpec((tb, in_dim), lambda i: (i, 0), memory_space=vmem),
            # weights / biases: constant index_map -> fetched once, VMEM-resident
            pl.BlockSpec((in_dim, hidden), lambda i: (0, 0), memory_space=vmem),
            pl.BlockSpec((1, hidden), lambda i: (0, 0), memory_space=vmem),
            pl.BlockSpec((hidden, n_skills), lambda i: (0, 0), memory_space=vmem),
            pl.BlockSpec((1, n_skills), lambda i: (0, 0), memory_space=vmem),
        ],
        # narrow output: block last dim == full array dim (n_skills), so no
        # lane padding and ~32x less HBM writeback than a 128-lane slab.
        out_specs=pl.BlockSpec((tb, n_skills), lambda i: (i, 0), memory_space=vmem),
        compiler_params=pltpu.CompilerParams(
            dimension_semantics=("parallel",),        # v7x megacore; no-op on v5e/v6e
            vmem_limit_bytes=32 * 1024 * 1024,        # above v5e's 16 MiB scoped default
        ),
    )(x_in, w1, b1, w2, b2)

    return out if b_pad == B else out[:B]


def init_params(key, in_dim, hidden, n_skills, dtype=jnp.float32):
    """nn.Linear-style init: U(-1/sqrt(fan_in), 1/sqrt(fan_in))."""
    k1, k2, k3, k4 = jax.random.split(key, 4)
    lim1 = 1.0 / jnp.sqrt(in_dim)
    lim2 = 1.0 / jnp.sqrt(hidden)
    w1 = jax.random.uniform(k1, (in_dim, hidden), dtype, -lim1, lim1)
    b1 = jax.random.uniform(k2, (1, hidden), dtype, -lim1, lim1)
    w2 = jax.random.uniform(k3, (hidden, n_skills), dtype, -lim2, lim2)
    b2 = jax.random.uniform(k4, (1, n_skills), dtype, -lim2, lim2)
    return w1, b1, w2, b2


if __name__ == "__main__":
    # args.rnn_hidden_dim = 32, args.n_actions = 8, args.n_skills = 4
    rnn_hidden_dim, n_actions, n_skills = 32, 8, 4
    batch = 8
    in_dim = rnn_hidden_dim + n_actions

    key = jax.random.PRNGKey(0)
    kx, kp = jax.random.split(key)
    x = jax.random.normal(kx, (batch, in_dim), jnp.float32)
    w1, b1, w2, b2 = init_params(kp, in_dim, rnn_hidden_dim, n_skills)

    pred_label = binary_classifier_forward(x, w1, b1, w2, b2)
    pred_label = jax.block_until_ready(pred_label)

    # pure-f32 reference (same semantics as the PyTorch module forward)
    ref = jnp.maximum(x @ w1 + b1, 0.0) @ w2 + b2

    assert pred_label.shape == (batch, n_skills)
    assert jnp.allclose(pred_label, ref, atol=1e-3, rtol=1e-3), (
        float(jnp.max(jnp.abs(pred_label - ref))))

    print("KERNEL_OK")
</pallas_src>

<mosaic_0001>
module attributes {stable_mosaic.version = 11 : i64} {
  func.func @_mlp_kernel(%arg0: i32, %arg1: memref<8x40xf32, #tpu.memory_space<vmem>>, %arg2: memref<40x32xf32, #tpu.memory_space<vmem>>, %arg3: memref<1x32xf32, #tpu.memory_space<vmem>>, %arg4: memref<32x4xf32, #tpu.memory_space<vmem>>, %arg5: memref<1x4xf32, #tpu.memory_space<vmem>>, %arg6: memref<8x4xf32, #tpu.memory_space<vmem>>) attributes {dimension_semantics = [#tpu.dimension_semantics<parallel>], iteration_bounds = array<i64: 1>, scalar_prefetch = 0 : i64, scratch_operands = 0 : i64, tpu.core_type = #tpu.core_type<tc>, window_params = [{transform_indices = @transform_0, window_bounds = array<i64: 8, 40>}, {pipeline_mode = #tpu.pipeline_mode<synchronous>, transform_indices = @transform_1, window_bounds = array<i64: 40, 32>}, {pipeline_mode = #tpu.pipeline_mode<synchronous>, transform_indices = @transform_2, window_bounds = array<i64: 1, 32>}, {pipeline_mode = #tpu.pipeline_mode<synchronous>, transform_indices = @transform_3, window_bounds = array<i64: 32, 4>}, {pipeline_mode = #tpu.pipeline_mode<synchronous>, transform_indices = @transform_4, window_bounds = array<i64: 1, 4>}, {transform_indices = @transform_5, window_bounds = array<i64: 8, 4>}]} {
    %c0 = arith.constant 0 : index
    %c0_0 = arith.constant 0 : index
    %0 = vector.load %arg1[%c0, %c0_0] : memref<8x40xf32, #tpu.memory_space<vmem>>, vector<8x40xf32>
    %c0_1 = arith.constant 0 : index
    %c0_2 = arith.constant 0 : index
    %1 = vector.load %arg2[%c0_1, %c0_2] : memref<40x32xf32, #tpu.memory_space<vmem>>, vector<40x32xf32>
    %cst = arith.constant dense<0.000000e+00> : vector<8x32xf32>
    %2 = tpu.matmul %0, %1, %cst {dimension_numbers = #tpu.dot_dimension_numbers<[1], [0], [0], [1], [0, 0, 1, 1], [], []>} : vector<8x40xf32>, vector<40x32xf32>, vector<8x32xf32> -> vector<8x32xf32>
    %c0_3 = arith.constant 0 : index
    %c0_4 = arith.constant 0 : index
    %3 = vector.load %arg3[%c0_3, %c0_4] : memref<1x32xf32, #tpu.memory_space<vmem>>, vector<1x32xf32>
    %4 = vector.broadcast %3 : vector<1x32xf32> to vector<8x32xf32>
    %5 = arith.addf %2, %4 : vector<8x32xf32>
    %cst_5 = arith.constant 0.000000e+00 : f32
    %6 = vector.broadcast %cst_5 : f32 to vector<8x32xf32>
    %7 = arith.maximumf %5, %6 : vector<8x32xf32>
    %c0_6 = arith.constant 0 : index
    %c0_7 = arith.constant 0 : index
    %8 = vector.load %arg4[%c0_6, %c0_7] : memref<32x4xf32, #tpu.memory_space<vmem>>, vector<32x4xf32>
    %cst_8 = arith.constant dense<0.000000e+00> : vector<8x4xf32>
    %9 = tpu.matmul %7, %8, %cst_8 {dimension_numbers = #tpu.dot_dimension_numbers<[1], [0], [0], [1], [0, 0, 1, 1], [], []>} : vector<8x32xf32>, vector<32x4xf32>, vector<8x4xf32> -> vector<8x4xf32>
    %c0_9 = arith.constant 0 : index
    %c0_10 = arith.constant 0 : index
    %10 = vector.load %arg5[%c0_9, %c0_10] : memref<1x4xf32, #tpu.memory_space<vmem>>, vector<1x4xf32>
    %11 = vector.broadcast %10 : vector<1x4xf32> to vector<8x4xf32>
    %12 = arith.addf %9, %11 : vector<8x4xf32>
    %c0_11 = arith.constant 0 : index
    %c0_12 = arith.constant 0 : index
    %13 = vector.load %arg6[%c0_11, %c0_12] : memref<8x4xf32, #tpu.memory_space<vmem>>, vector<8x4xf32>
    tpu.vector_store %arg6[%c0_11, %c0_12], %12 {strides = array<i32>} : memref<8x4xf32, #tpu.memory_space<vmem>>, vector<8x4xf32>,
    return
  }
  func.func @transform_0(%arg0: i32) -> (i32, i32) {
    %c0_i32 = arith.constant 0 : i32
    %c0_i32_0 = arith.constant 0 : i32
    return %arg0, %c0_i32 : i32, i32
  }
  func.func @transform_1(%arg0: i32) -> (i32, i32) {
    %c0_i32 = arith.constant 0 : i32
    %c0_i32_0 = arith.constant 0 : i32
    %c0_i32_1 = arith.constant 0 : i32
    return %c0_i32, %c0_i32_0 : i32, i32
  }
  func.func @transform_2(%arg0: i32) -> (i32, i32) {
    %c0_i32 = arith.constant 0 : i32
    %c0_i32_0 = arith.constant 0 : i32
    %c0_i32_1 = arith.constant 0 : i32
    return %c0_i32, %c0_i32_0 : i32, i32
  }
  func.func @transform_3(%arg0: i32) -> (i32, i32) {
    %c0_i32 = arith.constant 0 : i32
    %c0_i32_0 = arith.constant 0 : i32
    %c0_i32_1 = arith.constant 0 : i32
    return %c0_i32, %c0_i32_0 : i32, i32
  }
  func.func @transform_4(%arg0: i32) -> (i32, i32) {
    %c0_i32 = arith.constant 0 : i32
    %c0_i32_0 = arith.constant 0 : i32
    %c0_i32_1 = arith.constant 0 : i32
    return %c0_i32, %c0_i32_0 : i32, i32
  }
  func.func @transform_5(%arg0: i32) -> (i32, i32) {
    %c0_i32 = arith.constant 0 : i32
    %c0_i32_0 = arith.constant 0 : i32
    return %arg0, %c0_i32 : i32, i32
  }
}

</mosaic_0001>

<llo_original>
// kernel: tpu_custom_call.1
$region0: #{tpu_custom_call.1}
  #allocation0 [shape = 'u32[]', space=smem, size = 0x4, offset = 0x4, fixed_abs, tag = 'smem constant byte address 0x4 - core index']
  #allocation1 [shape = 'u32[72,128]{1,0:T(1,128)}', space=vmem, size = 0x9000, scoped, tag = 'internal scratch']
  %s0 = inlined_call_operand.vmem [shape: f32[8,40], index: 0, kind: input, shape index: {}]
  %s1 = inlined_call_operand.vmem [shape: f32[40,32], index: 1, kind: input, shape index: {}]
  %s2 = inlined_call_operand.vmem [shape: f32[1,32], index: 2, kind: input, shape index: {}]
  %s3 = inlined_call_operand.vmem [shape: f32[32,4], index: 3, kind: input, shape index: {}]
  %s4 = inlined_call_operand.vmem [shape: f32[1,4], index: 4, kind: input, shape index: {}]
  %s5 = inlined_call_operand.vmem [shape: f32[8,4], index: 5, kind: output, shape index: {}]
  %s6 = sld [smem:[#allocation0]]
  $region30: #{tpu_custom_call.1} parent=0
    _
  %s8 = ssub.s32 1, %s6
  %s9 = scalar_select 0, %s8, %s6
  // Predicated region
  $region2: #{tpu_custom_call.1} parent=0 // pred_check
    _
  $region3: #{tpu_custom_call.1} parent=0 // pred_check_branch
    %11 = sbr.rel (0) target = $region5
  $region4: #{tpu_custom_call.1} parent=0 // pred_region
    _
  $region5: #{tpu_custom_call.1} parent=0 // pred_fallthru
    _
  // Predicated region
  $region6: #{tpu_custom_call.1} parent=0 // pred_check
    _
  $region7: #{tpu_custom_call.1} parent=0 // pred_check_branch
    %13 = sbr.rel (0) target = $region9
  $region8: #{tpu_custom_call.1} parent=0 // pred_region
    _
  $region9: #{tpu_custom_call.1} parent=0 // pred_fallthru
    _
  // Predicated region
  $region10: #{tpu_custom_call.1} parent=0 // pred_check
    _
  $region11: #{tpu_custom_call.1} parent=0 // pred_check_branch
    %15 = sbr.rel (0) target = $region13
  $region12: #{tpu_custom_call.1} parent=0 // pred_region
    _
  $region13: #{tpu_custom_call.1} parent=0 // pred_fallthru
    _
  // Predicated region
  $region14: #{tpu_custom_call.1} parent=0 // pred_check
    _
  $region15: #{tpu_custom_call.1} parent=0 // pred_check_branch
    %17 = sbr.rel (0) target = $region17
  $region16: #{tpu_custom_call.1} parent=0 // pred_region
    _
  $region17: #{tpu_custom_call.1} parent=0 // pred_fallthru
    _
  // Predicated region
  $region18: #{tpu_custom_call.1} parent=0 // pred_check
    _
  $region19: #{tpu_custom_call.1} parent=0 // pred_check_branch
    %19 = sbr.rel (0) target = $region21
  $region20: #{tpu_custom_call.1} parent=0 // pred_region
    _
  $region21: #{tpu_custom_call.1} parent=0 // pred_fallthru
    _
  %v20 = vld [vmem:[%s0] sm:$0xff]
  %v21 = vld [vmem:[%s1] sm:$0xff]
  %v22 = vld [vmem:[%s1 + $0x8] sm:$0xff]
  %v23 = vld [vmem:[%s1 + $0x10] sm:$0xff]
  %v24 = vld [vmem:[%s1 + $0x18] sm:$0xff]
  %v25 = vld [vmem:[%s1 + $0x20] sm:$0xff]
  %v26 = vld [vmem:[%s2] sm:$0x1]
  %v28 = vperm.slane %v26, 0
  %vm30 = vcmask 326656
  %v32 = vsel %vm30, %v20, 0
  %34 = vmatpush.msra.mxu0 0.0
  %35 = vmatpush.msra.mxu0 0.0
  %36 = vmatpush.msra.mxu0 0.0
  %37 = vmatpush.msra.mxu0 0.0
  %38 = vmatpush.msra.mxu0 0.0
  %39 = vmatpush.msra.mxu0 0.0
  %40 = vmatpush.msra.mxu0 0.0
  %41 = vmatpush.msra.mxu0 0.0
  %42 = vmatpush.msra.mxu0 0.0
  %43 = vmatpush.msra.mxu0 0.0
  %44 = vmatpush.msra.mxu0 0.0
  %45 = vmatpush.msra.mxu0 %v25
  %46 = vmatpush.msra.mxu0 %v24
  %47 = vmatpush.msra.mxu0 %v23
  %48 = vmatpush.msra.mxu0 %v22
  %49 = vmatpush.msra.mxu0 %v21
  %50 = vmatmul.f32.gmra.mxu0 %v32
  %v51 = vpop.f32.mrf.mxu0
  %v52 = vadd.f32 %v28, %v51
  %53 = vdwg.mxu0
  %v54 = vmax.f32 %v52, 0.0
  %v55 = vld [vmem:[%s3] sm:$0xff]
  %v56 = vld [vmem:[%s3 + $0x8] sm:$0xff]
  %v57 = vld [vmem:[%s3 + $0x10] sm:$0xff]
  %v58 = vld [vmem:[%s3 + $0x18] sm:$0xff]
  %v59 = vld [vmem:[%s4] sm:$0x1]
  %v61 = vperm.slane %v59, 0
  %vm63 = vcmask 261120
  %v65 = vsel %vm63, %v54, 0
  %67 = vmatpush.msra.mxu0 0.0
  %68 = vmatpush.msra.mxu0 0.0
  %69 = vmatpush.msra.mxu0 0.0
  %70 = vmatpush.msra.mxu0 0.0
  %71 = vmatpush.msra.mxu0 0.0
  %72 = vmatpush.msra.mxu0 0.0
  %73 = vmatpush.msra.mxu0 0.0
  %74 = vmatpush.msra.mxu0 0.0
  %75 = vmatpush.msra.mxu0 0.0
  %76 = vmatpush.msra.mxu0 0.0
  %77 = vmatpush.msra.mxu0 0.0
  %78 = vmatpush.msra.mxu0 0.0
  %79 = vmatpush.msra.mxu0 %v58
  %80 = vmatpush.msra.mxu0 %v57
  %81 = vmatpush.msra.mxu0 %v56
  %82 = vmatpush.msra.mxu0 %v55
  %83 = vmatmul.f32.gmra.mxu0 %v65
  %v84 = vpop.f32.mrf.mxu0
  %v85 = vadd.f32 %v61, %v84
  %86 = vdwg.mxu0
  %vm87 = vcmask 31744
  %88 = vst.msk [vmem:[%s5] sm:$0xff] %vm87, %v85
  // Predicated region
  $region22: #{tpu_custom_call.1} parent=0 // pred_check
    _
  $region23: #{tpu_custom_call.1} parent=0 // pred_check_branch
    %90 = sbr.rel (0) target = $region25
  $region24: #{tpu_custom_call.1} parent=0 // pred_region
    _
  $region25: #{tpu_custom_call.1} parent=0 // pred_fallthru
    _
  // Predicated region
  $region26: #{tpu_custom_call.1} parent=0 // pred_check
    _
  $region27: #{tpu_custom_call.1} parent=0 // pred_check_branch
    %92 = sbr.rel (0) target = $region29
  $region28: #{tpu_custom_call.1} parent=0 // pred_region
    _
  $region29: #{tpu_custom_call.1} parent=0 // pred_fallthru
    _

</llo_original>
